<compile_context>
chip_gen: v5e
topology: v5e:2x2
jax: 0.10.0
libtpu: 0.0.40
codegen_flags: <defaults>
</compile_context>

<pallas_src>
import math

import jax
import jax.numpy as jnp
from jax.experimental import pallas as pl
from jax.experimental.pallas import tpu as pltpu


def _round_up(a, m):
    return (a + m - 1) // m * m


# ---------------------------------------------------------------------------
# Kernel
# ---------------------------------------------------------------------------
def transcoder_kernel(x_ref, b_dec_ref, w_enc_ref, b_enc_ref, w_dec_ref,
                      b_dec_out_ref, o_ref, acc_ref, sae_in_ref):
    k = pl.program_id(1)
    nk = pl.num_programs(1)

    @pl.when(k == 0)
    def _():
        # Hoisted once per row tile: sae_in = x - b_dec (f32 on the VPU), cast to
        # the MXU input dtype and kept in VMEM for all d_sae tiles.
        sae_in_ref[...] = (x_ref[...].astype(jnp.float32)
                           - b_dec_ref[...].astype(jnp.float32)).astype(sae_in_ref.dtype)

    # up_proj slice for this d_sae tile: (tm, tk), f32 accumulation on the MXU.
    hidden_pre = jnp.dot(sae_in_ref[...], w_enc_ref[...],
                         preferred_element_type=jnp.float32)
    feature_acts = jnp.maximum(hidden_pre + b_enc_ref[...].astype(jnp.float32), 0.0)

    # down_proj partial product for this d_sae tile, accumulated in f32 scratch.
    partial = jnp.dot(feature_acts.astype(w_dec_ref.dtype), w_dec_ref[...],
                      preferred_element_type=jnp.float32)

    @pl.when(k == 0)
    def _():
        acc_ref[...] = partial          # first step: write, no zero-init + RMW

    @pl.when(k > 0)
    def _():
        acc_ref[...] += partial

    @pl.when(k == nk - 1)
    def _():
        o_ref[...] = (acc_ref[...]
                      + b_dec_out_ref[...].astype(jnp.float32)).astype(o_ref.dtype)


# ---------------------------------------------------------------------------
# Tile-size / VMEM-budget selection (generation-aware)
# ---------------------------------------------------------------------------
def _vmem_capacity_bytes():
    try:
        info = pltpu.get_tpu_info()
        v = getattr(info, "vmem_capacity_bytes", None)
        if v:
            return int(v)
    except Exception:
        pass
    # Conservative fallback (safe on v7x's 64 MiB per-TC VMEM).
    return 64 * 1024 * 1024


def _vmem_estimate(tm, tk, d_in, d_out_p, x_b, w_b, o_b):
    # BlockSpec operands are double-buffered; scratch is single-buffered.
    x_buf = 2 * tm * d_in * x_b
    wenc = 2 * d_in * tk * w_b
    wdec = 2 * tk * d_out_p * w_b
    benc = 2 * tk * w_b
    bdec = 2 * d_in * w_b
    bdo = 2 * d_out_p * w_b
    out_buf = 2 * tm * d_out_p * o_b
    acc = tm * d_out_p * 4
    sae_in = tm * d_in * w_b
    return x_buf + wenc + wdec + benc + bdec + bdo + out_buf + acc + sae_in


def _select_tiles(N, d_in, d_sae_p, d_out_p, x_dtype, w_dtype, out_dtype):
    phys = _vmem_capacity_bytes()
    budget = (phys * 3) // 4            # ~96 MiB on v5e/v6e, ~48 MiB on v7x

    x_b = jnp.dtype(x_dtype).itemsize
    w_b = jnp.dtype(w_dtype).itemsize
    o_b = jnp.dtype(out_dtype).itemsize

    # d_sae tile candidates (lane-aligned, must divide padded d_sae).
    tk_cands = [t for t in (1024, 512, 256, 128)
                if t <= d_sae_p and d_sae_p % t == 0] or [d_sae_p]

    # Row tile candidates: multiples of 128, capped by N (8-aligned for tiny N).
    tm_cap = min(_round_up(N, 8), 1024)
    tm_cands = [t for t in (1024, 896, 768, 640, 512, 384, 256, 128)
                if t <= tm_cap] or [tm_cap]

    tm, tk = tm_cands[-1], tk_cands[-1]
    found = False
    for tm_c in tm_cands:               # tm first: it sets weight-stream amortization
        for tk_c in tk_cands:
            if _vmem_estimate(tm_c, tk_c, d_in, d_out_p, x_b, w_b, o_b) <= budget:
                tm, tk, found = tm_c, tk_c, True
                break
        if found:
            break

    # On v7x (64 MiB VMEM, 2 TensorCores) keep >= 2 row tiles when possible so
    # both cores get work on the "parallel" row axis.
    if phys <= 96 * 1024 * 1024:
        while tm >= 256 and tm % 256 == 0 and -(-N // tm) < 2:
            tm //= 2

    return tm, tk, budget


# ---------------------------------------------------------------------------
# One-time parameter padding (call once, outside the forward hot path)
# ---------------------------------------------------------------------------
def pad_params_for_kernel(b_dec, w_enc, b_enc, w_dec, b_dec_out):
    """Pads d_sae and d_out to multiples of 128 ONCE.  Returns padded params and
    the true d_out (used to slice the kernel output)."""
    d_sae = w_enc.shape[1]
    d_out = w_dec.shape[1]
    d_sae_p = _round_up(d_sae, 128)
    d_out_p = _round_up(d_out, 128)
    if d_sae_p != d_sae:
        w_enc = jnp.pad(w_enc, ((0, 0), (0, d_sae_p - d_sae)))
        b_enc = jnp.pad(b_enc, ((0, 0), (0, d_sae_p - d_sae)))
        w_dec = jnp.pad(w_dec, ((0, d_sae_p - d_sae), (0, 0)))
    if d_out_p != d_out:
        w_dec = jnp.pad(w_dec, ((0, 0), (0, d_out_p - d_out)))
        b_dec_out = jnp.pad(b_dec_out, ((0, 0), (0, d_out_p - d_out)))
    return (b_dec, w_enc, b_enc, w_dec, b_dec_out), d_out


# ---------------------------------------------------------------------------
# Forward wrapper
# ---------------------------------------------------------------------------
def transcoder_adapter_forward(x, b_dec, w_enc, b_enc, w_dec, b_dec_out,
                               *, d_out=None, tm=None, tk=None):
    """x: [N, d_in] -> [N, d_out].

    Expects parameters already padded with pad_params_for_kernel():
      b_dec: (1, d_in); w_enc: (d_in, d_sae_pad); b_enc: (1, d_sae_pad);
      w_dec: (d_sae_pad, d_out_pad); b_dec_out: (1, d_out_pad).
    Pass bf16 weights (and bf16 x) on v6e/v7x for best throughput; accumulation
    is always f32.
    """
    N, d_in = x.shape
    d_sae_p = w_enc.shape[1]
    d_out_p = w_dec.shape[1]
    if d_out is None:
        d_out = d_out_p
    if d_sae_p % 128 or d_out_p % 128:
        raise ValueError("Pad parameters once with pad_params_for_kernel(); "
                         "do not pad inside the forward path.")

    sel_tm, sel_tk, vmem_limit = _select_tiles(
        N, d_in, d_sae_p, d_out_p, x.dtype, w_enc.dtype, x.dtype)
    tm = sel_tm if tm is None else tm
    tk = sel_tk if tk is None else tk

    n_pad = _round_up(N, tm)
    if n_pad != N:
        x = jnp.pad(x, ((0, n_pad - N), (0, 0)))

    grid = (n_pad // tm, d_sae_p // tk)      # rows parallel, d_sae reduction last

    out = pl.pallas_call(
        transcoder_kernel,
        out_shape=jax.ShapeDtypeStruct((n_pad, d_out_p), x.dtype),
        grid_spec=pltpu.PrefetchScalarGridSpec(
            num_scalar_prefetch=0,
            grid=grid,
            in_specs=[
                pl.BlockSpec((tm, d_in), lambda i, k: (i, 0)),        # x row tile
                pl.BlockSpec((1, d_in), lambda i, k: (0, 0)),         # b_dec
                pl.BlockSpec((d_in, tk), lambda i, k: (0, k)),        # W_enc d_sae tile
                pl.BlockSpec((1, tk), lambda i, k: (0, k)),           # b_enc tile
                pl.BlockSpec((tk, d_out_p), lambda i, k: (k, 0)),     # W_dec d_sae tile
                pl.BlockSpec((1, d_out_p), lambda i, k: (0, 0)),      # b_dec_out
            ],
            out_specs=pl.BlockSpec((tm, d_out_p), lambda i, k: (i, 0)),
            scratch_shapes=[
                pltpu.VMEM((tm, d_out_p), jnp.float32),   # f32 accumulator
                pltpu.VMEM((tm, d_in), w_enc.dtype),      # hoisted sae_in (MXU dtype)
            ],
        ),
        compiler_params=pltpu.CompilerParams(
            dimension_semantics=("parallel", "arbitrary"),
            vmem_limit_bytes=int(vmem_limit),
        ),
    )(x, b_dec, w_enc, b_enc, w_dec, b_dec_out)

    if n_pad != N or d_out_p != d_out:
        out = out[:N, :d_out]
    return out


# ---------------------------------------------------------------------------
# Parameter init matching the PyTorch module, and a pure-JAX reference
# ---------------------------------------------------------------------------
def kaiming_uniform(key, shape, fan_in, dtype=jnp.float32):
    # torch.nn.init.kaiming_uniform_ defaults: a=0, fan_in mode, leaky_relu
    # -> gain = sqrt(2), bound = gain * sqrt(3 / fan_in) = sqrt(6 / fan_in)
    bound = math.sqrt(6.0 / fan_in)
    return jax.random.uniform(key, shape, dtype=dtype, minval=-bound, maxval=bound)


def init_params(key, d_in, d_sae, d_out, dtype=jnp.float32):
    k1, k2 = jax.random.split(key)
    # up_proj.weight: (d_sae, d_in), fan_in = d_in; kernel uses its transpose.
    up_w = kaiming_uniform(k1, (d_sae, d_in), fan_in=d_in, dtype=dtype)
    # down_proj.weight: (d_out, d_sae), fan_in = d_sae; then row-normalized (dim=1).
    down_w = kaiming_uniform(k2, (d_out, d_sae), fan_in=d_sae, dtype=dtype)
    down_w = down_w / jnp.linalg.norm(down_w, axis=1, keepdims=True)

    w_enc = up_w.T                             # (d_in, d_sae)
    w_dec = down_w.T                           # (d_sae, d_out)
    b_enc = jnp.zeros((1, d_sae), dtype)       # up_proj.bias (zeros)
    b_dec_out = jnp.zeros((1, d_out), dtype)   # down_proj.bias (zeros)
    b_dec = jnp.zeros((1, d_in), dtype)        # self.b_dec (zeros), d_out == d_in
    return b_dec, w_enc, b_enc, w_dec, b_dec_out


def reference_forward(x, b_dec, w_enc, b_enc, w_dec, b_dec_out):
    sae_in = x - b_dec
    hidden_pre = sae_in @ w_enc + b_enc
    feature_acts = jnp.maximum(hidden_pre, 0.0)
    return feature_acts @ w_dec + b_dec_out


if __name__ == "__main__":
    # Small shapes consistent with the module: d_in = d_out = 32, d_sae = 64,
    # N = 128 tokens (e.g. batch=16 x seq=8 flattened).
    d_in, d_sae, d_out = 32, 64, 32
    N = 128

    key = jax.random.PRNGKey(0)
    k_x, k_p = jax.random.split(key)

    x = jax.random.normal(k_x, (N, d_in), dtype=jnp.float32)
    b_dec, w_enc, b_enc, w_dec, b_dec_out = init_params(k_p, d_in, d_sae, d_out)

    # One-time lane-aligned padding of parameters (outside the forward hot path).
    padded_params, true_d_out = pad_params_for_kernel(
        b_dec, w_enc, b_enc, w_dec, b_dec_out)

    out = transcoder_adapter_forward(x, *padded_params, d_out=true_d_out)
    out = jax.block_until_ready(out)

    ref = reference_forward(x, b_dec, w_enc, b_enc, w_dec, b_dec_out)
    assert out.shape == (N, d_out)
    assert jnp.allclose(out, ref, atol=1e-5, rtol=1e-5), "mismatch vs. reference"

    print("KERNEL_OK")
</pallas_src>

<mosaic_0001>
module attributes {stable_mosaic.version = 11 : i64} {
  func.func @transcoder_kernel(%arg0: i32, %arg1: i32, %arg2: memref<128x32xf32, #tpu.memory_space<vmem>>, %arg3: memref<1x32xf32, #tpu.memory_space<vmem>>, %arg4: memref<32x128xf32, #tpu.memory_space<vmem>>, %arg5: memref<1x128xf32, #tpu.memory_space<vmem>>, %arg6: memref<128x128xf32, #tpu.memory_space<vmem>>, %arg7: memref<1x128xf32, #tpu.memory_space<vmem>>, %arg8: memref<128x128xf32, #tpu.memory_space<vmem>>, %arg9: memref<128x128xf32, #tpu.memory_space<vmem>>, %arg10: memref<128x32xf32, #tpu.memory_space<vmem>>) attributes {dimension_semantics = [#tpu.dimension_semantics<parallel>, #tpu.dimension_semantics<arbitrary>], iteration_bounds = array<i64: 1, 1>, scalar_prefetch = 0 : i64, scratch_operands = 2 : i64, tpu.core_type = #tpu.core_type<tc>, window_params = [{transform_indices = @transform_0, window_bounds = array<i64: 128, 32>}, {pipeline_mode = #tpu.pipeline_mode<synchronous>, transform_indices = @transform_1, window_bounds = array<i64: 1, 32>}, {transform_indices = @transform_2, window_bounds = array<i64: 32, 128>}, {transform_indices = @transform_3, window_bounds = array<i64: 1, 128>}, {transform_indices = @transform_4, window_bounds = array<i64: 128, 128>}, {pipeline_mode = #tpu.pipeline_mode<synchronous>, transform_indices = @transform_5, window_bounds = array<i64: 1, 128>}, {transform_indices = @transform_6, window_bounds = array<i64: 128, 128>}]} {
    %c0_i32 = arith.constant 0 : i32
    %0 = arith.cmpi eq, %arg1, %c0_i32 : i32
    %1 = arith.extui %0 : i1 to i32
    %c0_i32_0 = arith.constant 0 : i32
    %2 = arith.cmpi ne, %1, %c0_i32_0 : i32
    scf.if %2 {
      %c0_16 = arith.constant 0 : index
      %c0_17 = arith.constant 0 : index
      %22 = vector.load %arg2[%c0_16, %c0_17] : memref<128x32xf32, #tpu.memory_space<vmem>>, vector<128x32xf32>
      %c0_18 = arith.constant 0 : index
      %c0_19 = arith.constant 0 : index
      %23 = vector.load %arg3[%c0_18, %c0_19] : memref<1x32xf32, #tpu.memory_space<vmem>>, vector<1x32xf32>
      %24 = vector.broadcast %23 : vector<1x32xf32> to vector<128x32xf32>
      %25 = arith.subf %22, %24 : vector<128x32xf32>
      %c0_20 = arith.constant 0 : index
      %c0_21 = arith.constant 0 : index
      %26 = vector.load %arg10[%c0_20, %c0_21] : memref<128x32xf32, #tpu.memory_space<vmem>>, vector<128x32xf32>
      tpu.vector_store %arg10[%c0_20, %c0_21], %25 {strides = array<i32>} : memref<128x32xf32, #tpu.memory_space<vmem>>, vector<128x32xf32>,
    } else {
    }
    %c0 = arith.constant 0 : index
    %c0_1 = arith.constant 0 : index
    %3 = vector.load %arg10[%c0, %c0_1] : memref<128x32xf32, #tpu.memory_space<vmem>>, vector<128x32xf32>
    %c0_2 = arith.constant 0 : index
    %c0_3 = arith.constant 0 : index
    %4 = vector.load %arg4[%c0_2, %c0_3] : memref<32x128xf32, #tpu.memory_space<vmem>>, vector<32x128xf32>
    %cst = arith.constant dense<0.000000e+00> : vector<128x128xf32>
    %5 = tpu.matmul %3, %4, %cst {dimension_numbers = #tpu.dot_dimension_numbers<[1], [0], [0], [1], [0, 0, 1, 1], [], []>} : vector<128x32xf32>, vector<32x128xf32>, vector<128x128xf32> -> vector<128x128xf32>
    %c0_4 = arith.constant 0 : index
    %c0_5 = arith.constant 0 : index
    %6 = vector.load %arg5[%c0_4, %c0_5] : memref<1x128xf32, #tpu.memory_space<vmem>>, vector<1x128xf32>
    %7 = vector.broadcast %6 : vector<1x128xf32> to vector<128x128xf32>
    %8 = arith.addf %5, %7 : vector<128x128xf32>
    %cst_6 = arith.constant 0.000000e+00 : f32
    %9 = vector.broadcast %cst_6 : f32 to vector<128x128xf32>
    %10 = arith.maximumf %8, %9 : vector<128x128xf32>
    %c0_7 = arith.constant 0 : index
    %c0_8 = arith.constant 0 : index
    %11 = vector.load %arg6[%c0_7, %c0_8] : memref<128x128xf32, #tpu.memory_space<vmem>>, vector<128x128xf32>
    %cst_9 = arith.constant dense<0.000000e+00> : vector<128x128xf32>
    %12 = tpu.matmul %10, %11, %cst_9 {dimension_numbers = #tpu.dot_dimension_numbers<[1], [0], [0], [1], [0, 0, 1, 1], [], []>} : vector<128x128xf32>, vector<128x128xf32>, vector<128x128xf32> -> vector<128x128xf32>
    %c0_i32_10 = arith.constant 0 : i32
    %13 = arith.cmpi eq, %arg1, %c0_i32_10 : i32
    %14 = arith.extui %13 : i1 to i32
    %c0_i32_11 = arith.constant 0 : i32
    %15 = arith.cmpi ne, %14, %c0_i32_11 : i32
    scf.if %15 {
      %c0_16 = arith.constant 0 : index
      %c0_17 = arith.constant 0 : index
      %22 = vector.load %arg9[%c0_16, %c0_17] : memref<128x128xf32, #tpu.memory_space<vmem>>, vector<128x128xf32>
      tpu.vector_store %arg9[%c0_16, %c0_17], %12 {strides = array<i32>} : memref<128x128xf32, #tpu.memory_space<vmem>>, vector<128x128xf32>,
    } else {
    }
    %c0_i32_12 = arith.constant 0 : i32
    %16 = arith.cmpi sgt, %arg1, %c0_i32_12 : i32
    %17 = arith.extui %16 : i1 to i32
    %c0_i32_13 = arith.constant 0 : i32
    %18 = arith.cmpi ne, %17, %c0_i32_13 : i32
    scf.if %18 {
      %c0_16 = arith.constant 0 : index
      %c0_17 = arith.constant 0 : index
      %22 = vector.load %arg9[%c0_16, %c0_17] : memref<128x128xf32, #tpu.memory_space<vmem>>, vector<128x128xf32>
      %23 = arith.addf %22, %12 : vector<128x128xf32>
      %c0_18 = arith.constant 0 : index
      %c0_19 = arith.constant 0 : index
      %24 = vector.load %arg9[%c0_18, %c0_19] : memref<128x128xf32, #tpu.memory_space<vmem>>, vector<128x128xf32>
      tpu.vector_store %arg9[%c0_18, %c0_19], %23 {strides = array<i32>} : memref<128x128xf32, #tpu.memory_space<vmem>>, vector<128x128xf32>,
    } else {
    }
    %c0_i32_14 = arith.constant 0 : i32
    %19 = arith.cmpi eq, %arg1, %c0_i32_14 : i32
    %20 = arith.extui %19 : i1 to i32
    %c0_i32_15 = arith.constant 0 : i32
    %21 = arith.cmpi ne, %20, %c0_i32_15 : i32
    scf.if %21 {
      %c0_16 = arith.constant 0 : index
      %c0_17 = arith.constant 0 : index
      %22 = vector.load %arg9[%c0_16, %c0_17] : memref<128x128xf32, #tpu.memory_space<vmem>>, vector<128x128xf32>
      %c0_18 = arith.constant 0 : index
      %c0_19 = arith.constant 0 : index
      %23 = vector.load %arg7[%c0_18, %c0_19] : memref<1x128xf32, #tpu.memory_space<vmem>>, vector<1x128xf32>
      %24 = vector.broadcast %23 : vector<1x128xf32> to vector<128x128xf32>
      %25 = arith.addf %22, %24 : vector<128x128xf32>
      %c0_20 = arith.constant 0 : index
      %c0_21 = arith.constant 0 : index
      %26 = vector.load %arg8[%c0_20, %c0_21] : memref<128x128xf32, #tpu.memory_space<vmem>>, vector<128x128xf32>
      tpu.vector_store %arg8[%c0_20, %c0_21], %25 {strides = array<i32>} : memref<128x128xf32, #tpu.memory_space<vmem>>, vector<128x128xf32>,
    } else {
    }
    return
  }
  func.func @transform_0(%arg0: i32, %arg1: i32) -> (i32, i32) {
    %c0_i32 = arith.constant 0 : i32
    %c0_i32_0 = arith.constant 0 : i32
    return %arg0, %c0_i32 : i32, i32
  }
  func.func @transform_1(%arg0: i32, %arg1: i32) -> (i32, i32) {
    %c0_i32 = arith.constant 0 : i32
    %c0_i32_0 = arith.constant 0 : i32
    %c0_i32_1 = arith.constant 0 : i32
    return %c0_i32, %c0_i32_0 : i32, i32
  }
  func.func @transform_2(%arg0: i32, %arg1: i32) -> (i32, i32) {
    %c0_i32 = arith.constant 0 : i32
    %c0_i32_0 = arith.constant 0 : i32
    return %c0_i32, %arg1 : i32, i32
  }
  func.func @transform_3(%arg0: i32, %arg1: i32) -> (i32, i32) {
    %c0_i32 = arith.constant 0 : i32
    %c0_i32_0 = arith.constant 0 : i32
    return %c0_i32, %arg1 : i32, i32
  }
  func.func @transform_4(%arg0: i32, %arg1: i32) -> (i32, i32) {
    %c0_i32 = arith.constant 0 : i32
    %c0_i32_0 = arith.constant 0 : i32
    return %arg1, %c0_i32 : i32, i32
  }
  func.func @transform_5(%arg0: i32, %arg1: i32) -> (i32, i32) {
    %c0_i32 = arith.constant 0 : i32
    %c0_i32_0 = arith.constant 0 : i32
    %c0_i32_1 = arith.constant 0 : i32
    return %c0_i32, %c0_i32_0 : i32, i32
  }
  func.func @transform_6(%arg0: i32, %arg1: i32) -> (i32, i32) {
    %c0_i32 = arith.constant 0 : i32
    %c0_i32_0 = arith.constant 0 : i32
    return %arg0, %c0_i32 : i32, i32
  }
}

</mosaic_0001>

<llo_original>
// kernel: tpu_custom_call.1
$region0: #{tpu_custom_call.1}
  #allocation0 [shape = 'u32[]', space=smem, size = 0x4, offset = 0x4, fixed_abs, tag = 'smem constant byte address 0x4 - core index']
  #allocation1 [shape = 'u32[72,128]{1,0:T(1,128)}', space=vmem, size = 0x9000, scoped, tag = 'internal scratch']
  #allocation2 [shape = 'f32[128,128]{1,0:T(8,128)}', space=vmem, size = 0x10000, scoped, tag = 'scratch operand']
  #allocation3 [shape = 'f32[128,32]{1,0:T(8,128)}', space=vmem, size = 0x10000, scoped, tag = 'scratch operand']
  %s0 = inlined_call_operand.vmem [shape: f32[128,32], index: 0, kind: input, shape index: {}]
  %s1 = inlined_call_operand.vmem [shape: f32[1,32], index: 1, kind: input, shape index: {}]
  %s2 = inlined_call_operand.vmem [shape: f32[32,128], index: 2, kind: input, shape index: {}]
  %s3 = inlined_call_operand.vmem [shape: f32[1,128], index: 3, kind: input, shape index: {}]
  %s4 = inlined_call_operand.vmem [shape: f32[128,128], index: 4, kind: input, shape index: {}]
  %s5 = inlined_call_operand.vmem [shape: f32[1,128], index: 5, kind: input, shape index: {}]
  %s6 = inlined_call_operand.hbm [shape: f32[128,128], index: 6, kind: output, shape index: {}]
  %s7 = sld [smem:[#allocation0]]
  $region50: #{tpu_custom_call.1} parent=0
    _
  %s9 = ssub.s32 1, %s7
  %s10 = scalar_select 0, %s9, %s7
  $region1: #{tpu_custom_call.1} parent=0
    #allocation4 [shape = 'u8[65536]{0}', space=vmem, size = 0x10000, scoped, tag = 'output window, operand 0, single buffered']
    #allocation5 [shape = 's32[1]{0}', space=sflag, size = 0x4, scoped, tag = 'scoped memory for tpu_custom_call.1']
    %11 = vsyncpa [#allocation5], 0
    // Predicated region
    $region2: #{tpu_custom_call.1} parent=1 // pred_check
      _
    $region3: #{tpu_custom_call.1} parent=1 // pred_check_branch
      %13 = sbr.rel (0) target = $region5
    $region4: #{tpu_custom_call.1} parent=1 // pred_region
      _
    $region5: #{tpu_custom_call.1} parent=1 // pred_fallthru
      _
    // Predicated region
    $region6: #{tpu_custom_call.1} parent=1 // pred_check
      _
    $region7: #{tpu_custom_call.1} parent=1 // pred_check_branch
      %15 = sbr.rel (0) target = $region9
    $region8: #{tpu_custom_call.1} parent=1 // pred_region
      _
    $region9: #{tpu_custom_call.1} parent=1 // pred_fallthru
      _
    // Predicated region
    $region10: #{tpu_custom_call.1} parent=1 // pred_check
      _
    $region11: #{tpu_custom_call.1} parent=1 // pred_check_branch
      %17 = sbr.rel (0) target = $region13
    $region12: #{tpu_custom_call.1} parent=1 // pred_region
      _
    $region13: #{tpu_custom_call.1} parent=1 // pred_fallthru
      _
    // Predicated region
    $region14: #{tpu_custom_call.1} parent=1 // pred_check
      _
    $region15: #{tpu_custom_call.1} parent=1 // pred_check_branch
      %19 = sbr.rel (0) target = $region17
    $region16: #{tpu_custom_call.1} parent=1 // pred_region
      _
    $region17: #{tpu_custom_call.1} parent=1 // pred_fallthru
      _
    // Predicated region
    $region18: #{tpu_custom_call.1} parent=1 // pred_check
      _
    $region19: #{tpu_custom_call.1} parent=1 // pred_check_branch
      %21 = sbr.rel (0) target = $region21
    $region20: #{tpu_custom_call.1} parent=1 // pred_region
      _
    $region21: #{tpu_custom_call.1} parent=1 // pred_fallthru
      _
    // Predicated region
    $region22: #{tpu_custom_call.1} parent=1 // pred_check
      _
    $region23: #{tpu_custom_call.1} parent=1 // pred_check_branch
      %23 = sbr.rel (0) target = $region25
    $region24: #{tpu_custom_call.1} parent=1 // pred_region
      _
    $region25: #{tpu_custom_call.1} parent=1 // pred_fallthru
      _
    %p24 = scmp.eq.s32.totalorder 0, 0
    // Predicated region
    $region26: #{tpu_custom_call.1} parent=1 // pred_check
      %p25 = pneg %p24
    $region27: #{tpu_custom_call.1} parent=1 // pred_check_branch
      %27 = sbr.rel (%p25) target = $region29
    $region28: #{tpu_custom_call.1} parent=1 // pred_region
      %v28 = vld [vmem:[%s0] sm:$0xff]
      %v29 = vld [vmem:[%s0 + $0x8] sm:$0xff]
      %v30 = vld [vmem:[%s0 + $0x10] sm:$0xff]
      %v31 = vld [vmem:[%s0 + $0x18] sm:$0xff]
      %v32 = vld [vmem:[%s0 + $0x20] sm:$0xff]
      %v33 = vld [vmem:[%s0 + $0x28] sm:$0xff]
      %v34 = vld [vmem:[%s0 + $0x30] sm:$0xff]
      %v35 = vld [vmem:[%s0 + $0x38] sm:$0xff]
      %v36 = vld [vmem:[%s0 + $0x40] sm:$0xff]
      %v37 = vld [vmem:[%s0 + $0x48] sm:$0xff]
      %v38 = vld [vmem:[%s0 + $0x50] sm:$0xff]
      %v39 = vld [vmem:[%s0 + $0x58] sm:$0xff]
      %v40 = vld [vmem:[%s0 + $0x60] sm:$0xff]
      %v41 = vld [vmem:[%s0 + $0x68] sm:$0xff]
      %v42 = vld [vmem:[%s0 + $0x70] sm:$0xff]
      %v43 = vld [vmem:[%s0 + $0x78] sm:$0xff]
      %v44 = vld [vmem:[%s1] sm:$0x1]
      %v46 = vperm.slane %v44, 0
      %v48 = vsub.f32 %v28, %v46
      %v49 = vsub.f32 %v29, %v46
      %v50 = vsub.f32 %v30, %v46
      %v51 = vsub.f32 %v31, %v46
      %v52 = vsub.f32 %v32, %v46
      %v53 = vsub.f32 %v33, %v46
      %v54 = vsub.f32 %v34, %v46
      %v55 = vsub.f32 %v35, %v46
      %v56 = vsub.f32 %v36, %v46
      %v57 = vsub.f32 %v37, %v46
      %v58 = vsub.f32 %v38, %v46
      %v59 = vsub.f32 %v39, %v46
      %v60 = vsub.f32 %v40, %v46
      %v61 = vsub.f32 %v41, %v46
      %v62 = vsub.f32 %v42, %v46
      %v63 = vsub.f32 %v43, %v46
      %vm64 = vcmask 261120
      %65 = vst.msk [vmem:[#allocation3] sm:$0xff] %vm64, %v48
      %66 = vst.msk [vmem:[#allocation3 + $0x8] sm:$0xff] %vm64, %v49
      %67 = vst.msk [vmem:[#allocation3 + $0x10] sm:$0xff] %vm64, %v50
      %68 = vst.msk [vmem:[#allocation3 + $0x18] sm:$0xff] %vm64, %v51
      %69 = vst.msk [vmem:[#allocation3 + $0x20] sm:$0xff] %vm64, %v52
      %70 = vst.msk [vmem:[#allocation3 + $0x28] sm:$0xff] %vm64, %v53
      %71 = vst.msk [vmem:[#allocation3 + $0x30] sm:$0xff] %vm64, %v54
      %72 = vst.msk [vmem:[#allocation3 + $0x38] sm:$0xff] %vm64, %v55
      %73 = vst.msk [vmem:[#allocation3 + $0x40] sm:$0xff] %vm64, %v56
      %74 = vst.msk [vmem:[#allocation3 + $0x48] sm:$0xff] %vm64, %v57
      %75 = vst.msk [vmem:[#allocation3 + $0x50] sm:$0xff] %vm64, %v58
      %76 = vst.msk [vmem:[#allocation3 + $0x58] sm:$0xff] %vm64, %v59
      %77 = vst.msk [vmem:[#allocation3 + $0x60] sm:$0xff] %vm64, %v60
      %78 = vst.msk [vmem:[#allocation3 + $0x68] sm:$0xff] %vm64, %v61
      %79 = vst.msk [vmem:[#allocation3 + $0x70] sm:$0xff] %vm64, %v62
      %80 = vst.msk [vmem:[#allocation3 + $0x78] sm:$0xff] %vm64, %v63
    $region29: #{tpu_custom_call.1} parent=1 // pred_fallthru
      _
    %v81 = vld [vmem:[#allocation3] sm:$0xff]
    %v82 = vld [vmem:[#allocation3 + $0x8] sm:$0xff]
    %v83 = vld [vmem:[#allocation3 + $0x10] sm:$0xff]
    %v84 = vld [vmem:[#allocation3 + $0x18] sm:$0xff]
    %v85 = vld [vmem:[#allocation3 + $0x20] sm:$0xff]
    %v86 = vld [vmem:[#allocation3 + $0x28] sm:$0xff]
    %v87 = vld [vmem:[#allocation3 + $0x30] sm:$0xff]
    %v88 = vld [vmem:[#allocation3 + $0x38] sm:$0xff]
    %v89 = vld [vmem:[#allocation3 + $0x40] sm:$0xff]
    %v90 = vld [vmem:[#allocation3 + $0x48] sm:$0xff]
    %v91 = vld [vmem:[#allocation3 + $0x50] sm:$0xff]
    %v92 = vld [vmem:[#allocation3 + $0x58] sm:$0xff]
    %v93 = vld [vmem:[#allocation3 + $0x60] sm:$0xff]
    %v94 = vld [vmem:[#allocation3 + $0x68] sm:$0xff]
    %v95 = vld [vmem:[#allocation3 + $0x70] sm:$0xff]
    %v96 = vld [vmem:[#allocation3 + $0x78] sm:$0xff]
    %v97 = vld [vmem:[%s2] sm:$0xff]
    %v98 = vld [vmem:[%s2 + $0x8] sm:$0xff]
    %v99 = vld [vmem:[%s2 + $0x10] sm:$0xff]
    %v100 = vld [vmem:[%s2 + $0x18] sm:$0xff]
    %v101 = vld [vmem:[%s3] sm:$0x1]
    %v103 = vperm.slane %v101, 0
    %vm105 = vcmask 261120
    %v107 = vsel %vm105, %v81, 0
    %v110 = vsel %vm105, %v82, 0
    %v113 = vsel %vm105, %v83, 0
    %v116 = vsel %vm105, %v84, 0
    %v119 = vsel %vm105, %v85, 0
    %v122 = vsel %vm105, %v86, 0
    %v125 = vsel %vm105, %v87, 0
    %v128 = vsel %vm105, %v88, 0
    %v131 = vsel %vm105, %v89, 0
    %v134 = vsel %vm105, %v90, 0
    %v137 = vsel %vm105, %v91, 0
    %v140 = vsel %vm105, %v92, 0
    %v143 = vsel %vm105, %v93, 0
    %v146 = vsel %vm105, %v94, 0
    %v149 = vsel %vm105, %v95, 0
    %v152 = vsel %vm105, %v96, 0
    %154 = vmatpush.msra.mxu0 0.0
    %155 = vmatpush.msra.mxu0 0.0
    %156 = vmatpush.msra.mxu0 0.0
    %157 = vmatpush.msra.mxu0 0.0
    %158 = vmatpush.msra.mxu0 0.0
    %159 = vmatpush.msra.mxu0 0.0
    %160 = vmatpush.msra.mxu0 0.0
    %161 = vmatpush.msra.mxu0 0.0
    %162 = vmatpush.msra.mxu0 0.0
    %163 = vmatpush.msra.mxu0 0.0
    %164 = vmatpush.msra.mxu0 0.0
    %165 = vmatpush.msra.mxu0 0.0
    %166 = vmatpush.msra.mxu0 %v100
    %167 = vmatpush.msra.mxu0 %v99
    %168 = vmatpush.msra.mxu0 %v98
    %169 = vmatpush.msra.mxu0 %v97
    %170 = vmatmul.f32.gmra.mxu0 %v107
    %v171 = vpop.f32.mrf.mxu0
    %v172 = vadd.f32 %v103, %v171
    %173 = vmatmul.f32.gmra.mxu0 %v110
    %v174 = vpop.f32.mrf.mxu0
    %v175 = vadd.f32 %v103, %v174
    %176 = vmatmul.f32.gmra.mxu0 %v113
    %v177 = vpop.f32.mrf.mxu0
    %v178 = vadd.f32 %v103, %v177
    %179 = vmatmul.f32.gmra.mxu0 %v116
    %v180 = vpop.f32.mrf.mxu0
    %v181 = vadd.f32 %v103, %v180
    %182 = vmatmul.f32.gmra.mxu0 %v119
    %v183 = vpop.f32.mrf.mxu0
    %v184 = vadd.f32 %v103, %v183
    %185 = vmatmul.f32.gmra.mxu0 %v122
    %v186 = vpop.f32.mrf.mxu0
    %v187 = vadd.f32 %v103, %v186
    %188 = vmatmul.f32.gmra.mxu0 %v125
    %v189 = vpop.f32.mrf.mxu0
    %v190 = vadd.f32 %v103, %v189
    %191 = vmatmul.f32.gmra.mxu0 %v128
    %v192 = vpop.f32.mrf.mxu0
    %v193 = vadd.f32 %v103, %v192
    %194 = vmatmul.f32.gmra.mxu0 %v131
    %v195 = vpop.f32.mrf.mxu0
    %v196 = vadd.f32 %v103, %v195
    %197 = vmatmul.f32.gmra.mxu0 %v134
    %v198 = vpop.f32.mrf.mxu0
    %v199 = vadd.f32 %v103, %v198
    %200 = vmatmul.f32.gmra.mxu0 %v137
    %v201 = vpop.f32.mrf.mxu0
    %v202 = vadd.f32 %v103, %v201
    %203 = vmatmul.f32.gmra.mxu0 %v140
    %v204 = vpop.f32.mrf.mxu0
    %v205 = vadd.f32 %v103, %v204
    %206 = vmatmul.f32.gmra.mxu0 %v143
    %v207 = vpop.f32.mrf.mxu0
    %v208 = vadd.f32 %v103, %v207
    %209 = vmatmul.f32.gmra.mxu0 %v146
    %v210 = vpop.f32.mrf.mxu0
    %v211 = vadd.f32 %v103, %v210
    %212 = vmatmul.f32.gmra.mxu0 %v149
    %v213 = vpop.f32.mrf.mxu0
    %v214 = vadd.f32 %v103, %v213
    %215 = vmatmul.f32.gmra.mxu0 %v152
    %v216 = vpop.f32.mrf.mxu0
    %v217 = vadd.f32 %v103, %v216
    %218 = vdwg.mxu0
    %v219 = vmax.f32 %v172, 0.0
    %v220 = vmax.f32 %v175, 0.0
    %v221 = vmax.f32 %v178, 0.0
    %v222 = vmax.f32 %v181, 0.0
    %v223 = vmax.f32 %v184, 0.0
    %v224 = vmax.f32 %v187, 0.0
    %v225 = vmax.f32 %v190, 0.0
    %v226 = vmax.f32 %v193, 0.0
    %v227 = vmax.f32 %v196, 0.0
    %v228 = vmax.f32 %v199, 0.0
    %v229 = vmax.f32 %v202, 0.0
    %v230 = vmax.f32 %v205, 0.0
    %v231 = vmax.f32 %v208, 0.0
    %v232 = vmax.f32 %v211, 0.0
    %v233 = vmax.f32 %v214, 0.0
    %v234 = vmax.f32 %v217, 0.0
    %v235 = vld [vmem:[%s4] sm:$0xff]
    %v236 = vld [vmem:[%s4 + $0x8] sm:$0xff]
    %v237 = vld [vmem:[%s4 + $0x10] sm:$0xff]
    %v238 = vld [vmem:[%s4 + $0x18] sm:$0xff]
    %v239 = vld [vmem:[%s4 + $0x20] sm:$0xff]
    %v240 = vld [vmem:[%s4 + $0x28] sm:$0xff]
    %v241 = vld [vmem:[%s4 + $0x30] sm:$0xff]
    %v242 = vld [vmem:[%s4 + $0x38] sm:$0xff]
    %v243 = vld [vmem:[%s4 + $0x40] sm:$0xff]
    %v244 = vld [vmem:[%s4 + $0x48] sm:$0xff]
    %v245 = vld [vmem:[%s4 + $0x50] sm:$0xff]
    %v246 = vld [vmem:[%s4 + $0x58] sm:$0xff]
    %v247 = vld [vmem:[%s4 + $0x60] sm:$0xff]
    %v248 = vld [vmem:[%s4 + $0x68] sm:$0xff]
    %v249 = vld [vmem:[%s4 + $0x70] sm:$0xff]
    %v250 = vld [vmem:[%s4 + $0x78] sm:$0xff]
    %251 = vmatpush.msra.mxu0 %v250
    %252 = vmatpush.msra.mxu0 %v249
    %253 = vmatpush.msra.mxu0 %v248
    %254 = vmatpush.msra.mxu0 %v247
    %255 = vmatpush.msra.mxu0 %v246
    %256 = vmatpush.msra.mxu0 %v245
    %257 = vmatpush.msra.mxu0 %v244
    %258 = vmatpush.msra.mxu0 %v243
    %259 = vmatpush.msra.mxu0 %v242
    %260 = vmatpush.msra.mxu0 %v241
    %261 = vmatpush.msra.mxu0 %v240
    %262 = vmatpush.msra.mxu0 %v239
    %263 = vmatpush.msra.mxu0 %v238
    %264 = vmatpush.msra.mxu0 %v237
    %265 = vmatpush.msra.mxu0 %v236
    %266 = vmatpush.msra.mxu0 %v235
    %267 = vmatmul.f32.gmra.mxu0 %v219
    %v268 = vpop.f32.mrf.mxu0
    %v269 = vadd.f32 0.0, %v268
    %270 = vmatmul.f32.gmra.mxu0 %v220
    %v271 = vpop.f32.mrf.mxu0
    %v272 = vadd.f32 0.0, %v271
    %273 = vmatmul.f32.gmra.mxu0 %v221
    %v274 = vpop.f32.mrf.mxu0
    %v275 = vadd.f32 0.0, %v274
    %276 = vmatmul.f32.gmra.mxu0 %v222
    %v277 = vpop.f32.mrf.mxu0
    %v278 = vadd.f32 0.0, %v277
    %279 = vmatmul.f32.gmra.mxu0 %v223
    %v280 = vpop.f32.mrf.mxu0
    %v281 = vadd.f32 0.0, %v280
    %282 = vmatmul.f32.gmra.mxu0 %v224
    %v283 = vpop.f32.mrf.mxu0
    %v284 = vadd.f32 0.0, %v283
    %285 = vmatmul.f32.gmra.mxu0 %v225
    %v286 = vpop.f32.mrf.mxu0
    %v287 = vadd.f32 0.0, %v286
    %288 = vmatmul.f32.gmra.mxu0 %v226
    %v289 = vpop.f32.mrf.mxu0
    %v290 = vadd.f32 0.0, %v289
    %291 = vmatmul.f32.gmra.mxu0 %v227
    %v292 = vpop.f32.mrf.mxu0
    %v293 = vadd.f32 0.0, %v292
    %294 = vmatmul.f32.gmra.mxu0 %v228
    %v295 = vpop.f32.mrf.mxu0
    %v296 = vadd.f32 0.0, %v295
    %297 = vmatmul.f32.gmra.mxu0 %v229
    %v298 = vpop.f32.mrf.mxu0
    %v299 = vadd.f32 0.0, %v298
    %300 = vmatmul.f32.gmra.mxu0 %v230
    %v301 = vpop.f32.mrf.mxu0
    %v302 = vadd.f32 0.0, %v301
    %303 = vmatmul.f32.gmra.mxu0 %v231
    %v304 = vpop.f32.mrf.mxu0
    %v305 = vadd.f32 0.0, %v304
    %306 = vmatmul.f32.gmra.mxu0 %v232
    %v307 = vpop.f32.mrf.mxu0
    %v308 = vadd.f32 0.0, %v307
    %309 = vmatmul.f32.gmra.mxu0 %v233
    %v310 = vpop.f32.mrf.mxu0
    %v311 = vadd.f32 0.0, %v310
    %312 = vmatmul.f32.gmra.mxu0 %v234
    %v313 = vpop.f32.mrf.mxu0
    %v314 = vadd.f32 0.0, %v313
    %315 = vdwg.mxu0
    // Predicated region
    $region30: #{tpu_custom_call.1} parent=1 // pred_check
      %p316 = pneg %p24
    $region31: #{tpu_custom_call.1} parent=1 // pred_check_branch
      %318 = sbr.rel (%p316) target = $region33
    $region32: #{tpu_custom_call.1} parent=1 // pred_region
      %319 = vst [vmem:[#allocation2] sm:$0xff] %v269
      %320 = vst [vmem:[#allocation2 + $0x8] sm:$0xff] %v272
      %321 = vst [vmem:[#allocation2 + $0x10] sm:$0xff] %v275
      %322 = vst [vmem:[#allocation2 + $0x18] sm:$0xff] %v278
      %323 = vst [vmem:[#allocation2 + $0x20] sm:$0xff] %v281
      %324 = vst [vmem:[#allocation2 + $0x28] sm:$0xff] %v284
      %325 = vst [vmem:[#allocation2 + $0x30] sm:$0xff] %v287
      %326 = vst [vmem:[#allocation2 + $0x38] sm:$0xff] %v290
      %327 = vst [vmem:[#allocation2 + $0x40] sm:$0xff] %v293
      %328 = vst [vmem:[#allocation2 + $0x48] sm:$0xff] %v296
      %329 = vst [vmem:[#allocation2 + $0x50] sm:$0xff] %v299
      %330 = vst [vmem:[#allocation2 + $0x58] sm:$0xff] %v302
      %331 = vst [vmem:[#allocation2 + $0x60] sm:$0xff] %v305
      %332 = vst [vmem:[#allocation2 + $0x68] sm:$0xff] %v308
      %333 = vst [vmem:[#allocation2 + $0x70] sm:$0xff] %v311
      %334 = vst [vmem:[#allocation2 + $0x78] sm:$0xff] %v314
    $region33: #{tpu_custom_call.1} parent=1 // pred_fallthru
      _
    %p335 = scmp.gt.s32.totalorder 0, 0
    // Predicated region
    $region34: #{tpu_custom_call.1} parent=1 // pred_check
      %p336 = pneg %p335
    $region35: #{tpu_custom_call.1} parent=1 // pred_check_branch
      %338 = sbr.rel (%p336) target = $region37
    $region36: #{tpu_custom_call.1} parent=1 // pred_region
      %v339 = vld [vmem:[#allocation2] sm:$0xff]
      %v340 = vld [vmem:[#allocation2 + $0x8] sm:$0xff]
      %v341 = vld [vmem:[#allocation2 + $0x10] sm:$0xff]
      %v342 = vld [vmem:[#allocation2 + $0x18] sm:$0xff]
      %v343 = vld [vmem:[#allocation2 + $0x20] sm:$0xff]
      %v344 = vld [vmem:[#allocation2 + $0x28] sm:$0xff]
      %v345 = vld [vmem:[#allocation2 + $0x30] sm:$0xff]
      %v346 = vld [vmem:[#allocation2 + $0x38] sm:$0xff]
      %v347 = vld [vmem:[#allocation2 + $0x40] sm:$0xff]
      %v348 = vld [vmem:[#allocation2 + $0x48] sm:$0xff]
      %v349 = vld [vmem:[#allocation2 + $0x50] sm:$0xff]
      %v350 = vld [vmem:[#allocation2 + $0x58] sm:$0xff]
      %v351 = vld [vmem:[#allocation2 + $0x60] sm:$0xff]
      %v352 = vld [vmem:[#allocation2 + $0x68] sm:$0xff]
      %v353 = vld [vmem:[#allocation2 + $0x70] sm:$0xff]
      %v354 = vld [vmem:[#allocation2 + $0x78] sm:$0xff]
      %v355 = vadd.f32 %v339, %v269
      %v356 = vadd.f32 %v340, %v272
      %v357 = vadd.f32 %v341, %v275
      %v358 = vadd.f32 %v342, %v278
      %v359 = vadd.f32 %v343, %v281
      %v360 = vadd.f32 %v344, %v284
      %v361 = vadd.f32 %v345, %v287
      %v362 = vadd.f32 %v346, %v290
      %v363 = vadd.f32 %v347, %v293
      %v364 = vadd.f32 %v348, %v296
      %v365 = vadd.f32 %v349, %v299
      %v366 = vadd.f32 %v350, %v302
      %v367 = vadd.f32 %v351, %v305
      %v368 = vadd.f32 %v352, %v308
      %v369 = vadd.f32 %v353, %v311
      %v370 = vadd.f32 %v354, %v314
      %371 = vst [vmem:[#allocation2] sm:$0xff] %v355
      %372 = vst [vmem:[#allocation2 + $0x8] sm:$0xff] %v356
      %373 = vst [vmem:[#allocation2 + $0x10] sm:$0xff] %v357
      %374 = vst [vmem:[#allocation2 + $0x18] sm:$0xff] %v358
      %375 = vst [vmem:[#allocation2 + $0x20] sm:$0xff] %v359
      %376 = vst [vmem:[#allocation2 + $0x28] sm:$0xff] %v360
      %377 = vst [vmem:[#allocation2 + $0x30] sm:$0xff] %v361
      %378 = vst [vmem:[#allocation2 + $0x38] sm:$0xff] %v362
      %379 = vst [vmem:[#allocation2 + $0x40] sm:$0xff] %v363
      %380 = vst [vmem:[#allocation2 + $0x48] sm:$0xff] %v364
      %381 = vst [vmem:[#allocation2 + $0x50] sm:$0xff] %v365
      %382 = vst [vmem:[#allocation2 + $0x58] sm:$0xff] %v366
      %383 = vst [vmem:[#allocation2 + $0x60] sm:$0xff] %v367
      %384 = vst [vmem:[#allocation2 + $0x68] sm:$0xff] %v368
      %385 = vst [vmem:[#allocation2 + $0x70] sm:$0xff] %v369
      %386 = vst [vmem:[#allocation2 + $0x78] sm:$0xff] %v370
    $region37: #{tpu_custom_call.1} parent=1 // pred_fallthru
      _
    // Predicated region
    $region38: #{tpu_custom_call.1} parent=1 // pred_check
      %p387 = pneg %p24
    $region39: #{tpu_custom_call.1} parent=1 // pred_check_branch
      %389 = sbr.rel (%p387) target = $region41
    $region40: #{tpu_custom_call.1} parent=1 // pred_region
      %v390 = vld [vmem:[#allocation2] sm:$0xff]
      %v391 = vld [vmem:[#allocation2 + $0x8] sm:$0xff]
      %v392 = vld [vmem:[#allocation2 + $0x10] sm:$0xff]
      %v393 = vld [vmem:[#allocation2 + $0x18] sm:$0xff]
      %v394 = vld [vmem:[#allocation2 + $0x20] sm:$0xff]
      %v395 = vld [vmem:[#allocation2 + $0x28] sm:$0xff]
      %v396 = vld [vmem:[#allocation2 + $0x30] sm:$0xff]
      %v397 = vld [vmem:[#allocation2 + $0x38] sm:$0xff]
      %v398 = vld [vmem:[#allocation2 + $0x40] sm:$0xff]
      %v399 = vld [vmem:[#allocation2 + $0x48] sm:$0xff]
      %v400 = vld [vmem:[#allocation2 + $0x50] sm:$0xff]
      %v401 = vld [vmem:[#allocation2 + $0x58] sm:$0xff]
      %v402 = vld [vmem:[#allocation2 + $0x60] sm:$0xff]
      %v403 = vld [vmem:[#allocation2 + $0x68] sm:$0xff]
      %v404 = vld [vmem:[#allocation2 + $0x70] sm:$0xff]
      %v405 = vld [vmem:[#allocation2 + $0x78] sm:$0xff]
      %v406 = vld [vmem:[%s5] sm:$0x1]
      %v408 = vperm.slane %v406, 0
      %v410 = vadd.f32 %v390, %v408
      %v411 = vadd.f32 %v391, %v408
      %v412 = vadd.f32 %v392, %v408
      %v413 = vadd.f32 %v393, %v408
      %v414 = vadd.f32 %v394, %v408
      %v415 = vadd.f32 %v395, %v408
      %v416 = vadd.f32 %v396, %v408
      %v417 = vadd.f32 %v397, %v408
      %v418 = vadd.f32 %v398, %v408
      %v419 = vadd.f32 %v399, %v408
      %v420 = vadd.f32 %v400, %v408
      %v421 = vadd.f32 %v401, %v408
      %v422 = vadd.f32 %v402, %v408
      %v423 = vadd.f32 %v403, %v408
      %v424 = vadd.f32 %v404, %v408
      %v425 = vadd.f32 %v405, %v408
      %426 = vst [vmem:[#allocation4] sm:$0xff] %v410
      %427 = vst [vmem:[#allocation4 + $0x8] sm:$0xff] %v411
      %428 = vst [vmem:[#allocation4 + $0x10] sm:$0xff] %v412
      %429 = vst [vmem:[#allocation4 + $0x18] sm:$0xff] %v413
      %430 = vst [vmem:[#allocation4 + $0x20] sm:$0xff] %v414
      %431 = vst [vmem:[#allocation4 + $0x28] sm:$0xff] %v415
      %432 = vst [vmem:[#allocation4 + $0x30] sm:$0xff] %v416
      %433 = vst [vmem:[#allocation4 + $0x38] sm:$0xff] %v417
      %434 = vst [vmem:[#allocation4 + $0x40] sm:$0xff] %v418
      %435 = vst [vmem:[#allocation4 + $0x48] sm:$0xff] %v419
      %436 = vst [vmem:[#allocation4 + $0x50] sm:$0xff] %v420
      %437 = vst [vmem:[#allocation4 + $0x58] sm:$0xff] %v421
      %438 = vst [vmem:[#allocation4 + $0x60] sm:$0xff] %v422
      %439 = vst [vmem:[#allocation4 + $0x68] sm:$0xff] %v423
      %440 = vst [vmem:[#allocation4 + $0x70] sm:$0xff] %v424
      %441 = vst [vmem:[#allocation4 + $0x78] sm:$0xff] %v425
    $region41: #{tpu_custom_call.1} parent=1 // pred_fallthru
      _
    // Predicated region
    $region42: #{tpu_custom_call.1} parent=1 // pred_check
      _
    $region43: #{tpu_custom_call.1} parent=1 // pred_check_branch
      %443 = sbr.rel (0) target = $region45
    $region44: #{tpu_custom_call.1} parent=1 // pred_region
      %445 = vsyncadd [#allocation5], 0
      %s446 = sshll.u32 [#allocation4], 4
      %s447 = int_to_ptr.vmem [resolvable:$true] %s446
      %s448 = sshll.u32 %s6, 4
      %s449 = int_to_ptr.hbm [resolvable:$true] %s448
      %454 = dma.vmem_to_hbm [thread:$0]  %s447, 2048, %s449, [#allocation5], 128, 128, 8
    $region45: #{tpu_custom_call.1} parent=1 // pred_fallthru
      _
    // Predicated region
    $region46: #{tpu_custom_call.1} parent=1 // pred_check
      _
    $region47: #{tpu_custom_call.1} parent=1 // pred_check_branch
      %456 = sbr.rel (0) target = $region49
    $region48: #{tpu_custom_call.1} parent=1 // pred_region
      %458 = dma.done [#allocation5], 2048
    $region49: #{tpu_custom_call.1} parent=1 // pred_fallthru
      _
    %459 = vsyncpa [#allocation5], 1

</llo_original>
